<compile_context>
chip_gen: v5e
topology: v5e:2x2
jax: 0.10.0
libtpu: 0.0.40
codegen_flags: <defaults>
</compile_context>

<pallas_src>
import math

import jax
import jax.numpy as jnp
import numpy as np
from jax.experimental import pallas as pl
from jax.experimental.pallas import tpu as pltpu

# --- module hyper-parameters (small synthetic sizes) -------------------------
FEATURE_SIZE = 16      # feature_size
CLUSTER_SIZE = 8       # cluster_size
OUTPUT_DIM = 32        # output_dim
MAX_SAMPLES = 150      # hardcoded in NetVLADLoupe(max_samples=150)
BATCH = 2

EPS_NORM = 1e-12       # F.normalize eps
EPS_BN = 1e-5          # BatchNorm1d eps


# --- fused kernel -------------------------------------------------------------
def netvlad_fused_kernel(x_ref, cwt_ref, cb_ref, cw2t_ref, spread_ref,
                         mask_ref, sel_ref, hw_ref, gw_ref, gb_ref, out_ref):
    # x_ref:   (B, F, N)   feature-major samples
    # cwt_ref: (K, F)      cluster_weights^T
    # cb_ref:  (K, 1)      cluster_biases (column, lane-broadcast)
    # cw2t_ref:(K, F)      cluster_weights2^T
    # spread_ref: (F, F*K) spread[f, j] = 1 iff j // K == f
    # mask_ref: (B*K, F*K) mask[r, j]   = 1 iff j %  K == r % K
    # sel_ref:  (B, B*K)   sel[b, r]    = 1 iff r // K == b
    # hw_ref:  (F*K, D)    gw_ref: (D, D)   gb_ref: (1, D)
    # out_ref: (B, D)
    B, F, N = x_ref.shape
    K = cwt_ref.shape[0]

    cwt = cwt_ref[...]                      # (K, F)
    cb = cb_ref[...]                        # (K, 1)
    cw2t = cw2t_ref[...]                    # (K, F)

    ones_n = jnp.ones((N, 1), jnp.float32)  # a_sum on the MXU
    ones_f = jnp.ones((F, 1), jnp.float32)  # intra-norm ssq on the MXU
    eps2 = jnp.float32(EPS_NORM * EPS_NORM)

    vlads = []
    for b in range(B):                      # B is tiny -> static unroll
        xb = x_ref[b]                       # (F, N)

        # soft assignment in lane-dense (K, N) layout
        act = jnp.dot(cwt, xb, preferred_element_type=jnp.float32)    # (K, N)
        act = act + cb

        # softmax over clusters (sublane axis); EUP approx reciprocal
        act = act - jnp.max(act, axis=0, keepdims=True)
        act = jnp.exp(act)
        act = act * pl.reciprocal(jnp.sum(act, axis=0, keepdims=True),
                                  approx=True)

        # a_sum[k] = sum_n act[k, n]  (ones-column matmul, MXU)
        a_sum = jnp.dot(act, ones_n, preferred_element_type=jnp.float32)  # (K, 1)

        # vlad[k, f] = sum_n act[k, n] * x[f, n]
        vlad = jax.lax.dot_general(act, xb, (((1,), (1,)), ((), ())),
                                   preferred_element_type=jnp.float32)    # (K, F)
        vlads.append(vlad - a_sum * cw2t)

    # stack batches along sublanes: (B*K, F)
    vstack = jnp.concatenate(vlads, axis=0)

    # intra-normalization over the feature axis (lanes), per (b, k) row;
    # F.normalize max(norm, eps) clamp applied on norm^2
    ssq = jnp.dot(vstack * vstack, ones_f,
                  preferred_element_type=jnp.float32)                 # (B*K, 1)
    vstack = vstack * jax.lax.rsqrt(jnp.maximum(ssq, eps2))

    # lane-dense flatten to PyTorch's f-major/k-minor order:
    # v[b, f*K + k] = vstack[b*K + k, f]   (spread matmul + mask + selector matmul)
    tiled = jnp.dot(vstack, spread_ref[...],
                    preferred_element_type=jnp.float32)               # (B*K, F*K)
    v = jnp.dot(sel_ref[...], tiled * mask_ref[...],
                preferred_element_type=jnp.float32)                   # (B, F*K)

    # global L2 norm per batch row
    ssq2 = jnp.sum(v * v, axis=-1, keepdims=True)                     # (B, 1)
    v = v * jax.lax.rsqrt(jnp.maximum(ssq2, eps2))

    # hidden projection
    h = jnp.dot(v, hw_ref[...], preferred_element_type=jnp.float32)   # (B, D)

    # BatchNorm1d(output_dim), training mode: batch stats, gamma=1, beta=0
    # TODO(synk): running-mean/var buffer updates (training side effect) are
    # not modeled; they do not affect the forward output.
    mean = jnp.mean(h, axis=0, keepdims=True)
    var = jnp.mean((h - mean) * (h - mean), axis=0, keepdims=True)
    h = (h - mean) * jax.lax.rsqrt(var + EPS_BN)

    # context gating (add_batch_norm=False -> bias path)
    gates = jnp.dot(h, gw_ref[...], preferred_element_type=jnp.float32)
    gates = jax.nn.sigmoid(gates + gb_ref[...])
    out_ref[...] = h * gates


# --- wrapper ------------------------------------------------------------------
def netvlad_descriptor(x_nchw, params):
    B = x_nchw.shape[0]
    N, F, K, D = MAX_SAMPLES, FEATURE_SIZE, CLUSTER_SIZE, OUTPUT_DIM
    FK = F * K

    # The PyTorch module does x.transpose(1, 3).view(-1, N, F).  Feeding the
    # kernel the feature-major (B, F, N) layout is the same data and is a free
    # squeeze of the trailing W=1 dim (no XLA transpose of x at all).
    x_bfn = x_nchw.reshape(B, F, N).astype(jnp.float32)

    cwt = params["cluster_weights"].T                   # (K, F)  tiny transpose
    cb = params["cluster_biases"].reshape(K, 1)         # (K, 1)
    cw2t = params["cluster_weights2"].T                 # (K, F)
    hw = params["hidden1_weights"]                      # (F*K, D), f-major rows
    gw = params["gating_weights"]                       # (D, D)
    gb = params["gating_biases"].reshape(1, D)          # (1, D)

    # flatten helpers, baked as f32 constants (no in-kernel iota/compare work)
    j = np.arange(FK)
    spread = (j[None, :] // K == np.arange(F)[:, None]).astype(np.float32)          # (F, FK)
    mask = ((j[None, :] % K) ==
            (np.arange(B * K)[:, None] % K)).astype(np.float32)                      # (B*K, FK)
    sel = (np.arange(B * K)[None, :] // K ==
           np.arange(B)[:, None]).astype(np.float32)                                 # (B, B*K)

    # Note (v7x): at these toy sizes the whole problem fits one TensorCore;
    # for large batches, split the per-sample VLAD stage over a "parallel"
    # grid axis and keep the batch-coupled BN+gating head separate.
    return pl.pallas_call(
        netvlad_fused_kernel,
        out_shape=jax.ShapeDtypeStruct((B, D), jnp.float32),
        grid=(1,),
        in_specs=[
            pl.BlockSpec((B, F, N), lambda i: (0, 0, 0)),
            pl.BlockSpec((K, F), lambda i: (0, 0)),
            pl.BlockSpec((K, 1), lambda i: (0, 0)),
            pl.BlockSpec((K, F), lambda i: (0, 0)),
            pl.BlockSpec((F, FK), lambda i: (0, 0)),
            pl.BlockSpec((B * K, FK), lambda i: (0, 0)),
            pl.BlockSpec((B, B * K), lambda i: (0, 0)),
            pl.BlockSpec((FK, D), lambda i: (0, 0)),
            pl.BlockSpec((D, D), lambda i: (0, 0)),
            pl.BlockSpec((1, D), lambda i: (0, 0)),
        ],
        out_specs=pl.BlockSpec((B, D), lambda i: (0, 0)),
        compiler_params=pltpu.CompilerParams(
            dimension_semantics=("arbitrary",)),
    )(x_bfn, cwt, cb, cw2t, spread, mask, sel, hw, gw, gb)


# --- pure-JAX reference (mirrors the PyTorch forward) -------------------------
def reference(x_nchw, p):
    B = x_nchw.shape[0]
    N, F, K, D = MAX_SAMPLES, FEATURE_SIZE, CLUSTER_SIZE, OUTPUT_DIM
    hp = jax.lax.Precision.HIGHEST

    x = jnp.transpose(x_nchw, (0, 3, 2, 1)).reshape(B, N, F)
    act = jnp.einsum("bnf,fk->bnk", x, p["cluster_weights"], precision=hp)
    act = act + p["cluster_biases"]
    act = jax.nn.softmax(act, axis=-1)

    a_sum = jnp.sum(act, axis=1, keepdims=True)              # (B, 1, K)
    a = a_sum * p["cluster_weights2"][None]                  # (B, F, K)

    vlad = jnp.einsum("bnk,bnf->bkf", act, x, precision=hp)  # (B, K, F)
    vlad = jnp.transpose(vlad, (0, 2, 1)) - a                # (B, F, K)
    vlad = vlad / jnp.maximum(
        jnp.linalg.norm(vlad, axis=1, keepdims=True), EPS_NORM)
    vlad = vlad.reshape(B, K * F)
    vlad = vlad / jnp.maximum(
        jnp.linalg.norm(vlad, axis=1, keepdims=True), EPS_NORM)

    h = jnp.dot(vlad, p["hidden1_weights"], precision=hp)
    mean = jnp.mean(h, axis=0, keepdims=True)
    var = jnp.mean((h - mean) ** 2, axis=0, keepdims=True)
    h = (h - mean) / jnp.sqrt(var + EPS_BN)

    gates = jax.nn.sigmoid(
        jnp.dot(h, p["gating_weights"], precision=hp) + p["gating_biases"])
    return h * gates


# --- deterministic parameter init (matches __init__ shapes / scales) ----------
def init_params(key):
    ks = jax.random.split(key, 6)
    sF = 1.0 / math.sqrt(FEATURE_SIZE)
    sD = 1.0 / math.sqrt(OUTPUT_DIM)
    F, K, D = FEATURE_SIZE, CLUSTER_SIZE, OUTPUT_DIM
    return {
        "cluster_weights": jax.random.normal(ks[0], (F, K), jnp.float32) * sF,
        "cluster_biases": jax.random.normal(ks[1], (K,), jnp.float32) * sF,
        # stored as (F, K); PyTorch keeps it as (1, F, K)
        "cluster_weights2": jax.random.normal(ks[2], (F, K), jnp.float32) * sF,
        "hidden1_weights": jax.random.normal(ks[3], (K * F, D), jnp.float32) * sF,
        "gating_weights": jax.random.normal(ks[4], (D, D), jnp.float32) * sD,
        "gating_biases": jax.random.normal(ks[5], (D,), jnp.float32) * sD,
        # bn2 is BatchNorm1d(output_dim) with default affine init gamma=1, beta=0
    }


if __name__ == "__main__":
    key = jax.random.PRNGKey(0)
    k_x, k_p = jax.random.split(key)

    # NCHW input: (B, feature_size, max_samples, 1)
    x = jax.random.normal(k_x, (BATCH, FEATURE_SIZE, MAX_SAMPLES, 1), jnp.float32)
    params = init_params(k_p)

    out = jax.jit(netvlad_descriptor)(x, params)
    out = jax.block_until_ready(out)

    ref = jax.block_until_ready(reference(x, params))
    assert out.shape == (BATCH, OUTPUT_DIM)
    np.testing.assert_allclose(np.asarray(out), np.asarray(ref),
                               rtol=3e-2, atol=3e-2)
    print("KERNEL_OK")
</pallas_src>

<mosaic_0001>
module attributes {stable_mosaic.version = 11 : i64} {
  func.func @netvlad_fused_kernel(%arg0: i32, %arg1: memref<2x16x150xf32, #tpu.memory_space<vmem>>, %arg2: memref<8x16xf32, #tpu.memory_space<vmem>>, %arg3: memref<8x1xf32, #tpu.memory_space<vmem>>, %arg4: memref<8x16xf32, #tpu.memory_space<vmem>>, %arg5: memref<16x128xf32, #tpu.memory_space<vmem>>, %arg6: memref<16x128xf32, #tpu.memory_space<vmem>>, %arg7: memref<2x16xf32, #tpu.memory_space<vmem>>, %arg8: memref<128x32xf32, #tpu.memory_space<vmem>>, %arg9: memref<32x32xf32, #tpu.memory_space<vmem>>, %arg10: memref<1x32xf32, #tpu.memory_space<vmem>>, %arg11: memref<2x32xf32, #tpu.memory_space<vmem>>) attributes {dimension_semantics = [#tpu.dimension_semantics<arbitrary>], iteration_bounds = array<i64: 1>, scalar_prefetch = 0 : i64, scratch_operands = 0 : i64, tpu.core_type = #tpu.core_type<tc>, window_params = [{pipeline_mode = #tpu.pipeline_mode<synchronous>, transform_indices = @transform_0, window_bounds = array<i64: 2, 16, 150>}, {pipeline_mode = #tpu.pipeline_mode<synchronous>, transform_indices = @transform_1, window_bounds = array<i64: 8, 16>}, {pipeline_mode = #tpu.pipeline_mode<synchronous>, transform_indices = @transform_2, window_bounds = array<i64: 8, 1>}, {pipeline_mode = #tpu.pipeline_mode<synchronous>, transform_indices = @transform_3, window_bounds = array<i64: 8, 16>}, {pipeline_mode = #tpu.pipeline_mode<synchronous>, transform_indices = @transform_4, window_bounds = array<i64: 16, 128>}, {pipeline_mode = #tpu.pipeline_mode<synchronous>, transform_indices = @transform_5, window_bounds = array<i64: 16, 128>}, {pipeline_mode = #tpu.pipeline_mode<synchronous>, transform_indices = @transform_6, window_bounds = array<i64: 2, 16>}, {pipeline_mode = #tpu.pipeline_mode<synchronous>, transform_indices = @transform_7, window_bounds = array<i64: 128, 32>}, {pipeline_mode = #tpu.pipeline_mode<synchronous>, transform_indices = @transform_8, window_bounds = array<i64: 32, 32>}, {pipeline_mode = #tpu.pipeline_mode<synchronous>, transform_indices = @transform_9, window_bounds = array<i64: 1, 32>}, {pipeline_mode = #tpu.pipeline_mode<synchronous>, transform_indices = @transform_10, window_bounds = array<i64: 2, 32>}]} {
    %c0 = arith.constant 0 : index
    %c0_0 = arith.constant 0 : index
    %0 = vector.load %arg2[%c0, %c0_0] : memref<8x16xf32, #tpu.memory_space<vmem>>, vector<8x16xf32>
    %c0_1 = arith.constant 0 : index
    %c0_2 = arith.constant 0 : index
    %1 = vector.load %arg3[%c0_1, %c0_2] : memref<8x1xf32, #tpu.memory_space<vmem>>, vector<8x1xf32>
    %c0_3 = arith.constant 0 : index
    %c0_4 = arith.constant 0 : index
    %2 = vector.load %arg4[%c0_3, %c0_4] : memref<8x16xf32, #tpu.memory_space<vmem>>, vector<8x16xf32>
    %cst = arith.constant 1.000000e+00 : f32
    %3 = vector.broadcast %cst : f32 to vector<150x1xf32>
    %cst_5 = arith.constant 1.000000e+00 : f32
    %4 = vector.broadcast %cst_5 : f32 to vector<16x1xf32>
    %c0_6 = arith.constant 0 : index
    %c0_7 = arith.constant 0 : index
    %c0_8 = arith.constant 0 : index
    %5 = vector.load %arg1[%c0_6, %c0_7, %c0_8] : memref<2x16x150xf32, #tpu.memory_space<vmem>>, vector<1x16x150xf32>
    %6 = vector.shape_cast %5 : vector<1x16x150xf32> to vector<16x150xf32>
    %cst_9 = arith.constant dense<0.000000e+00> : vector<8x150xf32>
    %7 = tpu.matmul %0, %6, %cst_9 {dimension_numbers = #tpu.dot_dimension_numbers<[1], [0], [0], [1], [0, 0, 1, 1], [], []>} : vector<8x16xf32>, vector<16x150xf32>, vector<8x150xf32> -> vector<8x150xf32>
    %8 = vector.broadcast %1 : vector<8x1xf32> to vector<8x150xf32>
    %9 = arith.addf %7, %8 : vector<8x150xf32>
    %cst_10 = arith.constant dense<0xFF800000> : vector<150xf32>
    %10 = vector.multi_reduction <maximumf>, %9, %cst_10 [0] : vector<8x150xf32> to vector<150xf32>
    %11 = vector.shape_cast %10 : vector<150xf32> to vector<1x150xf32>
    %12 = vector.broadcast %11 : vector<1x150xf32> to vector<8x150xf32>
    %13 = arith.subf %9, %12 : vector<8x150xf32>
    %14 = math.exp %13 : vector<8x150xf32>
    %cst_11 = arith.constant dense<0.000000e+00> : vector<150xf32>
    %15 = vector.multi_reduction <add>, %14, %cst_11 [0] : vector<8x150xf32> to vector<150xf32>
    %16 = vector.shape_cast %15 : vector<150xf32> to vector<1x150xf32>
    %17 = tpu.reciprocal %16 {approx = true} : vector<1x150xf32> -> vector<1x150xf32>
    %18 = vector.broadcast %17 : vector<1x150xf32> to vector<8x150xf32>
    %19 = arith.mulf %14, %18 : vector<8x150xf32>
    %cst_12 = arith.constant dense<0.000000e+00> : vector<8x1xf32>
    %20 = tpu.matmul %19, %3, %cst_12 {dimension_numbers = #tpu.dot_dimension_numbers<[1], [0], [0], [1], [0, 0, 1, 1], [], []>} : vector<8x150xf32>, vector<150x1xf32>, vector<8x1xf32> -> vector<8x1xf32>
    %cst_13 = arith.constant dense<0.000000e+00> : vector<8x16xf32>
    %21 = tpu.matmul %19, %6, %cst_13 {dimension_numbers = #tpu.dot_dimension_numbers<[1], [1], [0], [0], [0, 0, 1, 0], [], []>} : vector<8x150xf32>, vector<16x150xf32>, vector<8x16xf32> -> vector<8x16xf32>
    %22 = vector.broadcast %20 : vector<8x1xf32> to vector<8x16xf32>
    %23 = arith.mulf %22, %2 : vector<8x16xf32>
    %24 = arith.subf %21, %23 : vector<8x16xf32>
    %c1 = arith.constant 1 : index
    %c0_14 = arith.constant 0 : index
    %c0_15 = arith.constant 0 : index
    %25 = vector.load %arg1[%c1, %c0_14, %c0_15] : memref<2x16x150xf32, #tpu.memory_space<vmem>>, vector<1x16x150xf32>
    %26 = vector.shape_cast %25 : vector<1x16x150xf32> to vector<16x150xf32>
    %cst_16 = arith.constant dense<0.000000e+00> : vector<8x150xf32>
    %27 = tpu.matmul %0, %26, %cst_16 {dimension_numbers = #tpu.dot_dimension_numbers<[1], [0], [0], [1], [0, 0, 1, 1], [], []>} : vector<8x16xf32>, vector<16x150xf32>, vector<8x150xf32> -> vector<8x150xf32>
    %28 = vector.broadcast %1 : vector<8x1xf32> to vector<8x150xf32>
    %29 = arith.addf %27, %28 : vector<8x150xf32>
    %cst_17 = arith.constant dense<0xFF800000> : vector<150xf32>
    %30 = vector.multi_reduction <maximumf>, %29, %cst_17 [0] : vector<8x150xf32> to vector<150xf32>
    %31 = vector.shape_cast %30 : vector<150xf32> to vector<1x150xf32>
    %32 = vector.broadcast %31 : vector<1x150xf32> to vector<8x150xf32>
    %33 = arith.subf %29, %32 : vector<8x150xf32>
    %34 = math.exp %33 : vector<8x150xf32>
    %cst_18 = arith.constant dense<0.000000e+00> : vector<150xf32>
    %35 = vector.multi_reduction <add>, %34, %cst_18 [0] : vector<8x150xf32> to vector<150xf32>
    %36 = vector.shape_cast %35 : vector<150xf32> to vector<1x150xf32>
    %37 = tpu.reciprocal %36 {approx = true} : vector<1x150xf32> -> vector<1x150xf32>
    %38 = vector.broadcast %37 : vector<1x150xf32> to vector<8x150xf32>
    %39 = arith.mulf %34, %38 : vector<8x150xf32>
    %cst_19 = arith.constant dense<0.000000e+00> : vector<8x1xf32>
    %40 = tpu.matmul %39, %3, %cst_19 {dimension_numbers = #tpu.dot_dimension_numbers<[1], [0], [0], [1], [0, 0, 1, 1], [], []>} : vector<8x150xf32>, vector<150x1xf32>, vector<8x1xf32> -> vector<8x1xf32>
    %cst_20 = arith.constant dense<0.000000e+00> : vector<8x16xf32>
    %41 = tpu.matmul %39, %26, %cst_20 {dimension_numbers = #tpu.dot_dimension_numbers<[1], [1], [0], [0], [0, 0, 1, 0], [], []>} : vector<8x150xf32>, vector<16x150xf32>, vector<8x16xf32> -> vector<8x16xf32>
    %42 = vector.broadcast %40 : vector<8x1xf32> to vector<8x16xf32>
    %43 = arith.mulf %42, %2 : vector<8x16xf32>
    %44 = arith.subf %41, %43 : vector<8x16xf32>
    %45 = tpu.concatenate %24, %44 in 0 : vector<8x16xf32>, vector<8x16xf32> -> vector<16x16xf32>
    %46 = arith.mulf %45, %45 : vector<16x16xf32>
    %cst_21 = arith.constant dense<0.000000e+00> : vector<16x1xf32>
    %47 = tpu.matmul %46, %4, %cst_21 {dimension_numbers = #tpu.dot_dimension_numbers<[1], [0], [0], [1], [0, 0, 1, 1], [], []>} : vector<16x16xf32>, vector<16x1xf32>, vector<16x1xf32> -> vector<16x1xf32>
    %cst_22 = arith.constant 1.000000e-24 : f32
    %48 = vector.broadcast %cst_22 : f32 to vector<16x1xf32>
    %49 = arith.maximumf %47, %48 : vector<16x1xf32>
    %50 = math.rsqrt %49 : vector<16x1xf32>
    %51 = vector.broadcast %50 : vector<16x1xf32> to vector<16x16xf32>
    %52 = arith.mulf %45, %51 : vector<16x16xf32>
    %c0_23 = arith.constant 0 : index
    %c0_24 = arith.constant 0 : index
    %53 = vector.load %arg5[%c0_23, %c0_24] : memref<16x128xf32, #tpu.memory_space<vmem>>, vector<16x128xf32>
    %cst_25 = arith.constant dense<0.000000e+00> : vector<16x128xf32>
    %54 = tpu.matmul %52, %53, %cst_25 {dimension_numbers = #tpu.dot_dimension_numbers<[1], [0], [0], [1], [0, 0, 1, 1], [], []>} : vector<16x16xf32>, vector<16x128xf32>, vector<16x128xf32> -> vector<16x128xf32>
    %c0_26 = arith.constant 0 : index
    %c0_27 = arith.constant 0 : index
    %55 = vector.load %arg7[%c0_26, %c0_27] : memref<2x16xf32, #tpu.memory_space<vmem>>, vector<2x16xf32>
    %c0_28 = arith.constant 0 : index
    %c0_29 = arith.constant 0 : index
    %56 = vector.load %arg6[%c0_28, %c0_29] : memref<16x128xf32, #tpu.memory_space<vmem>>, vector<16x128xf32>
    %57 = arith.mulf %54, %56 : vector<16x128xf32>
    %cst_30 = arith.constant dense<0.000000e+00> : vector<2x128xf32>
    %58 = tpu.matmul %55, %57, %cst_30 {dimension_numbers = #tpu.dot_dimension_numbers<[1], [0], [0], [1], [0, 0, 1, 1], [], []>} : vector<2x16xf32>, vector<16x128xf32>, vector<2x128xf32> -> vector<2x128xf32>
    %59 = arith.mulf %58, %58 : vector<2x128xf32>
    %cst_31 = arith.constant dense<0.000000e+00> : vector<2xf32>
    %60 = vector.multi_reduction <add>, %59, %cst_31 [1] : vector<2x128xf32> to vector<2xf32>
    %61 = vector.shape_cast %60 : vector<2xf32> to vector<2x1xf32>
    %cst_32 = arith.constant 1.000000e-24 : f32
    %62 = vector.broadcast %cst_32 : f32 to vector<2x1xf32>
    %63 = arith.maximumf %61, %62 : vector<2x1xf32>
    %64 = math.rsqrt %63 : vector<2x1xf32>
    %65 = vector.broadcast %64 : vector<2x1xf32> to vector<2x128xf32>
    %66 = arith.mulf %58, %65 : vector<2x128xf32>
    %c0_33 = arith.constant 0 : index
    %c0_34 = arith.constant 0 : index
    %67 = vector.load %arg8[%c0_33, %c0_34] : memref<128x32xf32, #tpu.memory_space<vmem>>, vector<128x32xf32>
    %cst_35 = arith.constant dense<0.000000e+00> : vector<2x32xf32>
    %68 = tpu.matmul %66, %67, %cst_35 {dimension_numbers = #tpu.dot_dimension_numbers<[1], [0], [0], [1], [0, 0, 1, 1], [], []>} : vector<2x128xf32>, vector<128x32xf32>, vector<2x32xf32> -> vector<2x32xf32>
    %cst_36 = arith.constant dense<0.000000e+00> : vector<32xf32>
    %69 = vector.multi_reduction <add>, %68, %cst_36 [0] : vector<2x32xf32> to vector<32xf32>
    %70 = vector.shape_cast %69 : vector<32xf32> to vector<1x32xf32>
    %cst_37 = arith.constant 2.000000e+00 : f32
    %71 = vector.broadcast %cst_37 : f32 to vector<1x32xf32>
    %72 = arith.divf %70, %71 : vector<1x32xf32>
    %73 = vector.broadcast %72 : vector<1x32xf32> to vector<2x32xf32>
    %74 = arith.subf %68, %73 : vector<2x32xf32>
    %75 = vector.broadcast %72 : vector<1x32xf32> to vector<2x32xf32>
    %76 = arith.subf %68, %75 : vector<2x32xf32>
    %77 = arith.mulf %74, %76 : vector<2x32xf32>
    %cst_38 = arith.constant dense<0.000000e+00> : vector<32xf32>
    %78 = vector.multi_reduction <add>, %77, %cst_38 [0] : vector<2x32xf32> to vector<32xf32>
    %79 = vector.shape_cast %78 : vector<32xf32> to vector<1x32xf32>
    %cst_39 = arith.constant 2.000000e+00 : f32
    %80 = vector.broadcast %cst_39 : f32 to vector<1x32xf32>
    %81 = arith.divf %79, %80 : vector<1x32xf32>
    %82 = vector.broadcast %72 : vector<1x32xf32> to vector<2x32xf32>
    %83 = arith.subf %68, %82 : vector<2x32xf32>
    %cst_40 = arith.constant 9.99999974E-6 : f32
    %84 = vector.broadcast %cst_40 : f32 to vector<1x32xf32>
    %85 = arith.addf %81, %84 : vector<1x32xf32>
    %86 = math.rsqrt %85 : vector<1x32xf32>
    %87 = vector.broadcast %86 : vector<1x32xf32> to vector<2x32xf32>
    %88 = arith.mulf %83, %87 : vector<2x32xf32>
    %c0_41 = arith.constant 0 : index
    %c0_42 = arith.constant 0 : index
    %89 = vector.load %arg9[%c0_41, %c0_42] : memref<32x32xf32, #tpu.memory_space<vmem>>, vector<32x32xf32>
    %cst_43 = arith.constant dense<0.000000e+00> : vector<2x32xf32>
    %90 = tpu.matmul %88, %89, %cst_43 {dimension_numbers = #tpu.dot_dimension_numbers<[1], [0], [0], [1], [0, 0, 1, 1], [], []>} : vector<2x32xf32>, vector<32x32xf32>, vector<2x32xf32> -> vector<2x32xf32>
    %c0_44 = arith.constant 0 : index
    %c0_45 = arith.constant 0 : index
    %91 = vector.load %arg10[%c0_44, %c0_45] : memref<1x32xf32, #tpu.memory_space<vmem>>, vector<1x32xf32>
    %92 = vector.broadcast %91 : vector<1x32xf32> to vector<2x32xf32>
    %93 = arith.addf %90, %92 : vector<2x32xf32>
    %94 = arith.negf %93 : vector<2x32xf32>
    %95 = math.exp %94 : vector<2x32xf32>
    %cst_46 = arith.constant 1.000000e+00 : f32
    %96 = vector.broadcast %cst_46 : f32 to vector<2x32xf32>
    %97 = arith.addf %96, %95 : vector<2x32xf32>
    %98 = arith.divf %96, %97 : vector<2x32xf32>
    %99 = arith.mulf %88, %98 : vector<2x32xf32>
    %c0_47 = arith.constant 0 : index
    %c0_48 = arith.constant 0 : index
    %100 = vector.load %arg11[%c0_47, %c0_48] : memref<2x32xf32, #tpu.memory_space<vmem>>, vector<2x32xf32>
    tpu.vector_store %arg11[%c0_47, %c0_48], %99 {strides = array<i32>} : memref<2x32xf32, #tpu.memory_space<vmem>>, vector<2x32xf32>,
    return
  }
  func.func @transform_0(%arg0: i32) -> (i32, i32, i32) {
    %c0_i32 = arith.constant 0 : i32
    %c0_i32_0 = arith.constant 0 : i32
    %c0_i32_1 = arith.constant 0 : i32
    %c0_i32_2 = arith.constant 0 : i32
    return %c0_i32, %c0_i32_0, %c0_i32_1 : i32, i32, i32
  }
  func.func @transform_1(%arg0: i32) -> (i32, i32) {
    %c0_i32 = arith.constant 0 : i32
    %c0_i32_0 = arith.constant 0 : i32
    %c0_i32_1 = arith.constant 0 : i32
    return %c0_i32, %c0_i32_0 : i32, i32
  }
  func.func @transform_2(%arg0: i32) -> (i32, i32) {
    %c0_i32 = arith.constant 0 : i32
    %c0_i32_0 = arith.constant 0 : i32
    %c0_i32_1 = arith.constant 0 : i32
    return %c0_i32, %c0_i32_0 : i32, i32
  }
  func.func @transform_3(%arg0: i32) -> (i32, i32) {
    %c0_i32 = arith.constant 0 : i32
    %c0_i32_0 = arith.constant 0 : i32
    %c0_i32_1 = arith.constant 0 : i32
    return %c0_i32, %c0_i32_0 : i32, i32
  }
  func.func @transform_4(%arg0: i32) -> (i32, i32) {
    %c0_i32 = arith.constant 0 : i32
    %c0_i32_0 = arith.constant 0 : i32
    %c0_i32_1 = arith.constant 0 : i32
    return %c0_i32, %c0_i32_0 : i32, i32
  }
  func.func @transform_5(%arg0: i32) -> (i32, i32) {
    %c0_i32 = arith.constant 0 : i32
    %c0_i32_0 = arith.constant 0 : i32
    %c0_i32_1 = arith.constant 0 : i32
    return %c0_i32, %c0_i32_0 : i32, i32
  }
  func.func @transform_6(%arg0: i32) -> (i32, i32) {
    %c0_i32 = arith.constant 0 : i32
    %c0_i32_0 = arith.constant 0 : i32
    %c0_i32_1 = arith.constant 0 : i32
    return %c0_i32, %c0_i32_0 : i32, i32
  }
  func.func @transform_7(%arg0: i32) -> (i32, i32) {
    %c0_i32 = arith.constant 0 : i32
    %c0_i32_0 = arith.constant 0 : i32
    %c0_i32_1 = arith.constant 0 : i32
    return %c0_i32, %c0_i32_0 : i32, i32
  }
  func.func @transform_8(%arg0: i32) -> (i32, i32) {
    %c0_i32 = arith.constant 0 : i32
    %c0_i32_0 = arith.constant 0 : i32
    %c0_i32_1 = arith.constant 0 : i32
    return %c0_i32, %c0_i32_0 : i32, i32
  }
  func.func @transform_9(%arg0: i32) -> (i32, i32) {
    %c0_i32 = arith.constant 0 : i32
    %c0_i32_0 = arith.constant 0 : i32
    %c0_i32_1 = arith.constant 0 : i32
    return %c0_i32, %c0_i32_0 : i32, i32
  }
  func.func @transform_10(%arg0: i32) -> (i32, i32) {
    %c0_i32 = arith.constant 0 : i32
    %c0_i32_0 = arith.constant 0 : i32
    %c0_i32_1 = arith.constant 0 : i32
    return %c0_i32, %c0_i32_0 : i32, i32
  }
}

</mosaic_0001>

<llo_original>
// kernel: netvlad_descriptor.1
$region0: #{netvlad_descriptor.1}
  #allocation0 [shape = 'u32[]', space=smem, size = 0x4, offset = 0x4, fixed_abs, tag = 'smem constant byte address 0x4 - core index']
  #allocation1 [shape = 'u32[72,128]{1,0:T(1,128)}', space=vmem, size = 0x9000, scoped, tag = 'internal scratch']
  %s0 = inlined_call_operand.vmem [shape: f32[2,16,150], index: 0, kind: input, shape index: {}]
  %s1 = inlined_call_operand.vmem [shape: f32[8,16], index: 1, kind: input, shape index: {}]
  %s2 = inlined_call_operand.vmem [shape: f32[8,1], index: 2, kind: input, shape index: {}]
  %s3 = inlined_call_operand.vmem [shape: f32[8,16], index: 3, kind: input, shape index: {}]
  %s4 = inlined_call_operand.vmem [shape: f32[16,128], index: 4, kind: input, shape index: {}]
  %s5 = inlined_call_operand.vmem [shape: f32[16,128], index: 5, kind: input, shape index: {}]
  %s6 = inlined_call_operand.vmem [shape: f32[2,16], index: 6, kind: input, shape index: {}]
  %s7 = inlined_call_operand.vmem [shape: f32[128,32], index: 7, kind: input, shape index: {}]
  %s8 = inlined_call_operand.vmem [shape: f32[32,32], index: 8, kind: input, shape index: {}]
  %s9 = inlined_call_operand.vmem [shape: f32[1,32], index: 9, kind: input, shape index: {}]
  %s10 = inlined_call_operand.hbm [shape: f32[2,32], index: 10, kind: output, shape index: {}]
  %s11 = sld [smem:[#allocation0]]
  $region50: #{netvlad_descriptor.1} parent=0
    _
  %s13 = ssub.s32 1, %s11
  %s14 = scalar_select 0, %s13, %s11
  $region1: #{netvlad_descriptor.1} parent=0
    #allocation2 [shape = 'u8[1024]{0}', space=vmem, size = 0x400, scoped, tag = 'output window, operand 0, single buffered']
    #allocation3 [shape = 's32[1]{0}', space=sflag, size = 0x4, scoped, tag = 'scoped memory for netvlad_descriptor.1']
    %15 = vsyncpa [#allocation3], 0
    // Predicated region
    $region2: #{netvlad_descriptor.1} parent=1 // pred_check
      _
    $region3: #{netvlad_descriptor.1} parent=1 // pred_check_branch
      %17 = sbr.rel (0) target = $region5
    $region4: #{netvlad_descriptor.1} parent=1 // pred_region
      _
    $region5: #{netvlad_descriptor.1} parent=1 // pred_fallthru
      _
    // Predicated region
    $region6: #{netvlad_descriptor.1} parent=1 // pred_check
      _
    $region7: #{netvlad_descriptor.1} parent=1 // pred_check_branch
      %19 = sbr.rel (0) target = $region9
    $region8: #{netvlad_descriptor.1} parent=1 // pred_region
      _
    $region9: #{netvlad_descriptor.1} parent=1 // pred_fallthru
      _
    // Predicated region
    $region10: #{netvlad_descriptor.1} parent=1 // pred_check
      _
    $region11: #{netvlad_descriptor.1} parent=1 // pred_check_branch
      %21 = sbr.rel (0) target = $region13
    $region12: #{netvlad_descriptor.1} parent=1 // pred_region
      _
    $region13: #{netvlad_descriptor.1} parent=1 // pred_fallthru
      _
    // Predicated region
    $region14: #{netvlad_descriptor.1} parent=1 // pred_check
      _
    $region15: #{netvlad_descriptor.1} parent=1 // pred_check_branch
      %23 = sbr.rel (0) target = $region17
    $region16: #{netvlad_descriptor.1} parent=1 // pred_region
      _
    $region17: #{netvlad_descriptor.1} parent=1 // pred_fallthru
      _
    // Predicated region
    $region18: #{netvlad_descriptor.1} parent=1 // pred_check
      _
    $region19: #{netvlad_descriptor.1} parent=1 // pred_check_branch
      %25 = sbr.rel (0) target = $region21
    $region20: #{netvlad_descriptor.1} parent=1 // pred_region
      _
    $region21: #{netvlad_descriptor.1} parent=1 // pred_fallthru
      _
    // Predicated region
    $region22: #{netvlad_descriptor.1} parent=1 // pred_check
      _
    $region23: #{netvlad_descriptor.1} parent=1 // pred_check_branch
      %27 = sbr.rel (0) target = $region25
    $region24: #{netvlad_descriptor.1} parent=1 // pred_region
      _
    $region25: #{netvlad_descriptor.1} parent=1 // pred_fallthru
      _
    // Predicated region
    $region26: #{netvlad_descriptor.1} parent=1 // pred_check
      _
    $region27: #{netvlad_descriptor.1} parent=1 // pred_check_branch
      %29 = sbr.rel (0) target = $region29
    $region28: #{netvlad_descriptor.1} parent=1 // pred_region
      _
    $region29: #{netvlad_descriptor.1} parent=1 // pred_fallthru
      _
    // Predicated region
    $region30: #{netvlad_descriptor.1} parent=1 // pred_check
      _
    $region31: #{netvlad_descriptor.1} parent=1 // pred_check_branch
      %31 = sbr.rel (0) target = $region33
    $region32: #{netvlad_descriptor.1} parent=1 // pred_region
      _
    $region33: #{netvlad_descriptor.1} parent=1 // pred_fallthru
      _
    // Predicated region
    $region34: #{netvlad_descriptor.1} parent=1 // pred_check
      _
    $region35: #{netvlad_descriptor.1} parent=1 // pred_check_branch
      %33 = sbr.rel (0) target = $region37
    $region36: #{netvlad_descriptor.1} parent=1 // pred_region
      _
    $region37: #{netvlad_descriptor.1} parent=1 // pred_fallthru
      _
    // Predicated region
    $region38: #{netvlad_descriptor.1} parent=1 // pred_check
      _
    $region39: #{netvlad_descriptor.1} parent=1 // pred_check_branch
      %35 = sbr.rel (0) target = $region41
    $region40: #{netvlad_descriptor.1} parent=1 // pred_region
      _
    $region41: #{netvlad_descriptor.1} parent=1 // pred_fallthru
      _
    %v36 = vld [vmem:[%s1] sm:$0xff]
    %v37 = vld [vmem:[%s2] sm:$0xff]
    %v38 = vld [vmem:[%s3] sm:$0xff]
    %v39 = vld [vmem:[%s0] sm:$0xff]
    %v40 = vld [vmem:[%s0 + $0x8] sm:$0xff]
    %v41 = vld [vmem:[%s0 + $0x10] sm:$0xff]
    %v42 = vld [vmem:[%s0 + $0x18] sm:$0xff]
    %44 = vset.pattern.permute.xlu0 0
    %45 = vperm.xlu0 %44, %v37
    %v46 = vpop.permute.xlu0 %45
    %vm48 = vcmask 130048
    %v50 = vsel %vm48, %v36, 0
    %52 = vmatpush.msra.mxu0 0.0
    %53 = vmatpush.msra.mxu0 0.0
    %54 = vmatpush.msra.mxu0 0.0
    %55 = vmatpush.msra.mxu0 0.0
    %56 = vmatpush.msra.mxu0 0.0
    %57 = vmatpush.msra.mxu0 0.0
    %58 = vmatpush.msra.mxu0 0.0
    %59 = vmatpush.msra.mxu0 0.0
    %60 = vmatpush.msra.mxu0 0.0
    %61 = vmatpush.msra.mxu0 0.0
    %62 = vmatpush.msra.mxu0 0.0
    %63 = vmatpush.msra.mxu0 0.0
    %64 = vmatpush.msra.mxu0 0.0
    %65 = vmatpush.msra.mxu0 0.0
    %66 = vmatpush.msra.mxu0 %v41
    %67 = vmatpush.msra.mxu0 %v39
    %68 = vmatmul.f32.gmra.mxu0 %v50
    %v69 = vpop.f32.mrf.mxu0
    %v70 = vadd.f32 %v46, %v69
    %71 = vdwg.mxu0
    %72 = vmatpush.msra.mxu0 0.0
    %73 = vmatpush.msra.mxu0 0.0
    %74 = vmatpush.msra.mxu0 0.0
    %75 = vmatpush.msra.mxu0 0.0
    %76 = vmatpush.msra.mxu0 0.0
    %77 = vmatpush.msra.mxu0 0.0
    %78 = vmatpush.msra.mxu0 0.0
    %79 = vmatpush.msra.mxu0 0.0
    %80 = vmatpush.msra.mxu0 0.0
    %81 = vmatpush.msra.mxu0 0.0
    %82 = vmatpush.msra.mxu0 0.0
    %83 = vmatpush.msra.mxu0 0.0
    %84 = vmatpush.msra.mxu0 0.0
    %85 = vmatpush.msra.mxu0 0.0
    %86 = vmatpush.msra.mxu0 %v42
    %87 = vmatpush.msra.mxu0 %v40
    %88 = vmatmul.f32.gmra.mxu0 %v50
    %v89 = vpop.f32.mrf.mxu0
    %v90 = vadd.f32 %v46, %v89
    %91 = vdwg.mxu0
    %v92 = vrot.slane %v70, 4
    %v93 = vmax.f32 %v70, %v92
    %v94 = vrot.slane %v93, 2
    %v95 = vmax.f32 %v93, %v94
    %v96 = vrot.slane %v95, 1
    %v97 = vmax.f32 %v95, %v96
    %vm98 = vcmask 179200
    %v99 = vsel %vm98, %v90, -inf
    %v100 = vrot.slane %v99, 4
    %v101 = vmax.f32 %v99, %v100
    %v102 = vrot.slane %v101, 2
    %v103 = vmax.f32 %v101, %v102
    %v104 = vrot.slane %v103, 1
    %v105 = vmax.f32 %v103, %v104
    %v106 = vsub.f32 %v70, %v97
    %v107 = vsub.f32 %v90, %v105
    %v108 = vmul.f32 %v106, 1.442695
    %v109 = vpow.pop %v108
    %v110 = vmul.f32 %v107, 1.442695
    %v111 = vpow.pop %v110
    %v112 = vrot.slane %v109, 4
    %v113 = vadd.f32 %v109, %v112
    %v114 = vrot.slane %v113, 2
    %v115 = vadd.f32 %v113, %v114
    %v116 = vrot.slane %v115, 1
    %v117 = vadd.f32 %v115, %v116
    %v118 = vsel %vm98, %v111, 0.0
    %v119 = vrot.slane %v118, 4
    %v120 = vadd.f32 %v118, %v119
    %v121 = vrot.slane %v120, 2
    %v122 = vadd.f32 %v120, %v121
    %v123 = vrot.slane %v122, 1
    %v124 = vadd.f32 %v122, %v123
    %v125 = vrcp.pop %v117
    %v126 = vrcp.pop %v124
    %v127 = vmul.f32 %v109, %v125
    %v128 = vmul.f32 %v111, %v126
    %v130 = vsel %vm98, %v128, 0
    %vm132 = vcmask 1045504
    %v134 = vsel %vm132, 1.0, 0
    %136 = vmatpush.msra.mxu0 1.0
    %137 = vmatpush.msra.mxu0 1.0
    %138 = vmatpush.msra.mxu0 1.0
    %139 = vmatpush.msra.mxu0 1.0
    %140 = vmatpush.msra.mxu0 1.0
    %141 = vmatpush.msra.mxu0 1.0
    %142 = vmatpush.msra.mxu0 1.0
    %143 = vmatpush.msra.mxu0 1.0
    %144 = vmatpush.msra.mxu0 1.0
    %145 = vmatpush.msra.mxu0 1.0
    %146 = vmatpush.msra.mxu0 1.0
    %147 = vmatpush.msra.mxu0 1.0
    %148 = vmatpush.msra.mxu0 1.0
    %149 = vmatpush.msra.mxu0 1.0
    %150 = vmatpush.msra.mxu0 1.0
    %151 = vmatpush.msra.mxu0 1.0
    %152 = vmatmul.f32.gmra.mxu0 %v127
    %v153 = vpop.f32.mrf.mxu0
    %v154 = vadd.f32 0.0, %v153
    %155 = vdwg.mxu0
    %156 = vmatpush.msra.mxu0 0.0
    %157 = vmatpush.msra.mxu0 0.0
    %158 = vmatpush.msra.mxu0 0.0
    %159 = vmatpush.msra.mxu0 0.0
    %160 = vmatpush.msra.mxu0 0.0
    %161 = vmatpush.msra.mxu0 0.0
    %162 = vmatpush.msra.mxu0 0.0
    %163 = vmatpush.msra.mxu0 0.0
    %164 = vmatpush.msra.mxu0 0.0
    %165 = vmatpush.msra.mxu0 0.0
    %166 = vmatpush.msra.mxu0 0.0
    %167 = vmatpush.msra.mxu0 0.0
    %168 = vmatpush.msra.mxu0 0.0
    %169 = vmatpush.msra.mxu0 %v134
    %170 = vmatpush.msra.mxu0 1.0
    %171 = vmatpush.msra.mxu0 1.0
    %172 = vmatmul.f32.gmra.mxu0 %v130
    %v173 = vpop.f32.mrf.mxu0
    %v174 = vadd.f32 %v154, %v173
    %175 = vdwg.mxu0
    %v177 = vsel %vm98, %v40, 0
    %v180 = vsel %vm98, %v42, 0
    %182 = vmatpush.xpose.msra.mxu0 0.0
    %183 = vmatpush.xpose.msra.mxu0 0.0
    %184 = vmatpush.xpose.msra.mxu0 0.0
    %185 = vmatpush.xpose.msra.mxu0 0.0
    %186 = vmatpush.xpose.msra.mxu0 0.0
    %187 = vmatpush.xpose.msra.mxu0 0.0
    %188 = vmatpush.xpose.msra.mxu0 0.0
    %189 = vmatpush.xpose.msra.mxu0 0.0
    %190 = vmatpush.xpose.msra.mxu0 0.0
    %191 = vmatpush.xpose.msra.mxu0 0.0
    %192 = vmatpush.xpose.msra.mxu0 0.0
    %193 = vmatpush.xpose.msra.mxu0 0.0
    %194 = vmatpush.xpose.msra.mxu0 0.0
    %195 = vmatpush.xpose.msra.mxu0 0.0
    %196 = vmatpush.xpose.msra.mxu0 %v41
    %197 = vmatpush.xpose.msra.mxu0 %v39
    %198 = vmatmul.f32.gmra.mxu0 %v127
    %v199 = vpop.f32.mrf.mxu0
    %v200 = vadd.f32 0.0, %v199
    %201 = vdwg.mxu0
    %202 = vmatpush.xpose.msra.mxu0 0.0
    %203 = vmatpush.xpose.msra.mxu0 0.0
    %204 = vmatpush.xpose.msra.mxu0 0.0
    %205 = vmatpush.xpose.msra.mxu0 0.0
    %206 = vmatpush.xpose.msra.mxu0 0.0
    %207 = vmatpush.xpose.msra.mxu0 0.0
    %208 = vmatpush.xpose.msra.mxu0 0.0
    %209 = vmatpush.xpose.msra.mxu0 0.0
    %210 = vmatpush.xpose.msra.mxu0 0.0
    %211 = vmatpush.xpose.msra.mxu0 0.0
    %212 = vmatpush.xpose.msra.mxu0 0.0
    %213 = vmatpush.xpose.msra.mxu0 0.0
    %214 = vmatpush.xpose.msra.mxu0 0.0
    %215 = vmatpush.xpose.msra.mxu0 0.0
    %216 = vmatpush.xpose.msra.mxu0 %v180
    %217 = vmatpush.xpose.msra.mxu0 %v177
    %218 = vmatmul.f32.gmra.mxu0 %v130
    %v219 = vpop.f32.mrf.mxu0
    %v220 = vadd.f32 %v200, %v219
    %221 = vdwg.mxu0
    %223 = vset.pattern.permute.xlu0 0
    %224 = vperm.xlu0 %223, %v174
    %v225 = vpop.permute.xlu0 %224
    %v227 = vmul.f32 %v225, %v38
    %v228 = vsub.f32 %v220, %v227
    %s229 = scalar_lea.vmem %s0, 32
    %v230 = vld [vmem:[%s229] sm:$0xff]
    %v231 = vld [vmem:[%s229 + $0x8] sm:$0xff]
    %v232 = vld [vmem:[%s229 + $0x10] sm:$0xff]
    %v233 = vld [vmem:[%s229 + $0x18] sm:$0xff]
    %234 = vmatpush.msra.mxu0 0.0
    %235 = vmatpush.msra.mxu0 0.0
    %236 = vmatpush.msra.mxu0 0.0
    %237 = vmatpush.msra.mxu0 0.0
    %238 = vmatpush.msra.mxu0 0.0
    %239 = vmatpush.msra.mxu0 0.0
    %240 = vmatpush.msra.mxu0 0.0
    %241 = vmatpush.msra.mxu0 0.0
    %242 = vmatpush.msra.mxu0 0.0
    %243 = vmatpush.msra.mxu0 0.0
    %244 = vmatpush.msra.mxu0 0.0
    %245 = vmatpush.msra.mxu0 0.0
    %246 = vmatpush.msra.mxu0 0.0
    %247 = vmatpush.msra.mxu0 0.0
    %248 = vmatpush.msra.mxu0 %v232
    %249 = vmatpush.msra.mxu0 %v230
    %250 = vmatmul.f32.gmra.mxu0 %v50
    %v251 = vpop.f32.mrf.mxu0
    %v252 = vadd.f32 %v46, %v251
    %253 = vdwg.mxu0
    %254 = vmatpush.msra.mxu0 0.0
    %255 = vmatpush.msra.mxu0 0.0
    %256 = vmatpush.msra.mxu0 0.0
    %257 = vmatpush.msra.mxu0 0.0
    %258 = vmatpush.msra.mxu0 0.0
    %259 = vmatpush.msra.mxu0 0.0
    %260 = vmatpush.msra.mxu0 0.0
    %261 = vmatpush.msra.mxu0 0.0
    %262 = vmatpush.msra.mxu0 0.0
    %263 = vmatpush.msra.mxu0 0.0
    %264 = vmatpush.msra.mxu0 0.0
    %265 = vmatpush.msra.mxu0 0.0
    %266 = vmatpush.msra.mxu0 0.0
    %267 = vmatpush.msra.mxu0 0.0
    %268 = vmatpush.msra.mxu0 %v233
    %269 = vmatpush.msra.mxu0 %v231
    %270 = vmatmul.f32.gmra.mxu0 %v50
    %v271 = vpop.f32.mrf.mxu0
    %v272 = vadd.f32 %v46, %v271
    %273 = vdwg.mxu0
    %v274 = vrot.slane %v252, 4
    %v275 = vmax.f32 %v252, %v274
    %v276 = vrot.slane %v275, 2
    %v277 = vmax.f32 %v275, %v276
    %v278 = vrot.slane %v277, 1
    %v279 = vmax.f32 %v277, %v278
    %v280 = vsel %vm98, %v272, -inf
    %v281 = vrot.slane %v280, 4
    %v282 = vmax.f32 %v280, %v281
    %v283 = vrot.slane %v282, 2
    %v284 = vmax.f32 %v282, %v283
    %v285 = vrot.slane %v284, 1
    %v286 = vmax.f32 %v284, %v285
    %v287 = vsub.f32 %v252, %v279
    %v288 = vsub.f32 %v272, %v286
    %v289 = vmul.f32 %v287, 1.442695
    %v290 = vpow.pop %v289
    %v291 = vmul.f32 %v288, 1.442695
    %v292 = vpow.pop %v291
    %v293 = vrot.slane %v290, 4
    %v294 = vadd.f32 %v290, %v293
    %v295 = vrot.slane %v294, 2
    %v296 = vadd.f32 %v294, %v295
    %v297 = vrot.slane %v296, 1
    %v298 = vadd.f32 %v296, %v297
    %v299 = vsel %vm98, %v292, 0.0
    %v300 = vrot.slane %v299, 4
    %v301 = vadd.f32 %v299, %v300
    %v302 = vrot.slane %v301, 2
    %v303 = vadd.f32 %v301, %v302
    %v304 = vrot.slane %v303, 1
    %v305 = vadd.f32 %v303, %v304
    %v306 = vrcp.pop %v298
    %v307 = vrcp.pop %v305
    %v308 = vmul.f32 %v290, %v306
    %v309 = vmul.f32 %v292, %v307
    %v311 = vsel %vm98, %v309, 0
    %313 = vmatpush.msra.mxu0 1.0
    %314 = vmatpush.msra.mxu0 1.0
    %315 = vmatpush.msra.mxu0 1.0
    %316 = vmatpush.msra.mxu0 1.0
    %317 = vmatpush.msra.mxu0 1.0
    %318 = vmatpush.msra.mxu0 1.0
    %319 = vmatpush.msra.mxu0 1.0
    %320 = vmatpush.msra.mxu0 1.0
    %321 = vmatpush.msra.mxu0 1.0
    %322 = vmatpush.msra.mxu0 1.0
    %323 = vmatpush.msra.mxu0 1.0
    %324 = vmatpush.msra.mxu0 1.0
    %325 = vmatpush.msra.mxu0 1.0
    %326 = vmatpush.msra.mxu0 1.0
    %327 = vmatpush.msra.mxu0 1.0
    %328 = vmatpush.msra.mxu0 1.0
    %329 = vmatmul.f32.gmra.mxu0 %v308
    %v330 = vpop.f32.mrf.mxu0
    %v331 = vadd.f32 0.0, %v330
    %332 = vdwg.mxu0
    %333 = vmatpush.msra.mxu0 0.0
    %334 = vmatpush.msra.mxu0 0.0
    %335 = vmatpush.msra.mxu0 0.0
    %336 = vmatpush.msra.mxu0 0.0
    %337 = vmatpush.msra.mxu0 0.0
    %338 = vmatpush.msra.mxu0 0.0
    %339 = vmatpush.msra.mxu0 0.0
    %340 = vmatpush.msra.mxu0 0.0
    %341 = vmatpush.msra.mxu0 0.0
    %342 = vmatpush.msra.mxu0 0.0
    %343 = vmatpush.msra.mxu0 0.0
    %344 = vmatpush.msra.mxu0 0.0
    %345 = vmatpush.msra.mxu0 0.0
    %346 = vmatpush.msra.mxu0 %v134
    %347 = vmatpush.msra.mxu0 1.0
    %348 = vmatpush.msra.mxu0 1.0
    %349 = vmatmul.f32.gmra.mxu0 %v311
    %v350 = vpop.f32.mrf.mxu0
    %v351 = vadd.f32 %v331, %v350
    %352 = vdwg.mxu0
    %v354 = vsel %vm98, %v231, 0
    %v357 = vsel %vm98, %v233, 0
    %359 = vmatpush.xpose.msra.mxu0 0.0
    %360 = vmatpush.xpose.msra.mxu0 0.0
    %361 = vmatpush.xpose.msra.mxu0 0.0
    %362 = vmatpush.xpose.msra.mxu0 0.0
    %363 = vmatpush.xpose.msra.mxu0 0.0
    %364 = vmatpush.xpose.msra.mxu0 0.0
    %365 = vmatpush.xpose.msra.mxu0 0.0
    %366 = vmatpush.xpose.msra.mxu0 0.0
    %367 = vmatpush.xpose.msra.mxu0 0.0
    %368 = vmatpush.xpose.msra.mxu0 0.0
    %369 = vmatpush.xpose.msra.mxu0 0.0
    %370 = vmatpush.xpose.msra.mxu0 0.0
    %371 = vmatpush.xpose.msra.mxu0 0.0
    %372 = vmatpush.xpose.msra.mxu0 0.0
    %373 = vmatpush.xpose.msra.mxu0 %v232
    %374 = vmatpush.xpose.msra.mxu0 %v230
    %375 = vmatmul.f32.gmra.mxu0 %v308
    %v376 = vpop.f32.mrf.mxu0
    %v377 = vadd.f32 0.0, %v376
    %378 = vdwg.mxu0
    %379 = vmatpush.xpose.msra.mxu0 0.0
    %380 = vmatpush.xpose.msra.mxu0 0.0
    %381 = vmatpush.xpose.msra.mxu0 0.0
    %382 = vmatpush.xpose.msra.mxu0 0.0
    %383 = vmatpush.xpose.msra.mxu0 0.0
    %384 = vmatpush.xpose.msra.mxu0 0.0
    %385 = vmatpush.xpose.msra.mxu0 0.0
    %386 = vmatpush.xpose.msra.mxu0 0.0
    %387 = vmatpush.xpose.msra.mxu0 0.0
    %388 = vmatpush.xpose.msra.mxu0 0.0
    %389 = vmatpush.xpose.msra.mxu0 0.0
    %390 = vmatpush.xpose.msra.mxu0 0.0
    %391 = vmatpush.xpose.msra.mxu0 0.0
    %392 = vmatpush.xpose.msra.mxu0 0.0
    %393 = vmatpush.xpose.msra.mxu0 %v357
    %394 = vmatpush.xpose.msra.mxu0 %v354
    %395 = vmatmul.f32.gmra.mxu0 %v311
    %v396 = vpop.f32.mrf.mxu0
    %v397 = vadd.f32 %v377, %v396
    %398 = vdwg.mxu0
    %400 = vset.pattern.permute.xlu0 0
    %401 = vperm.xlu0 %400, %v351
    %v402 = vpop.permute.xlu0 %401
    %v404 = vmul.f32 %v402, %v38
    %v405 = vsub.f32 %v397, %v404
    %v406 = vmul.f32 %v228, %v228
    %v407 = vmul.f32 %v405, %v405
    %v409 = vsel %vm48, %v406, 0
    %v412 = vsel %vm48, %v407, 0
    %414 = vmatpush.msra.mxu0 0.0
    %415 = vmatpush.msra.mxu0 0.0
    %416 = vmatpush.msra.mxu0 0.0
    %417 = vmatpush.msra.mxu0 0.0
    %418 = vmatpush.msra.mxu0 0.0
    %419 = vmatpush.msra.mxu0 0.0
    %420 = vmatpush.msra.mxu0 0.0
    %421 = vmatpush.msra.mxu0 0.0
    %422 = vmatpush.msra.mxu0 0.0
    %423 = vmatpush.msra.mxu0 0.0
    %424 = vmatpush.msra.mxu0 0.0
    %425 = vmatpush.msra.mxu0 0.0
    %426 = vmatpush.msra.mxu0 0.0
    %427 = vmatpush.msra.mxu0 0.0
    %428 = vmatpush.msra.mxu0 1.0
    %429 = vmatpush.msra.mxu0 1.0
    %430 = vmatmul.f32.gmra.mxu0 %v409
    %v431 = vpop.f32.mrf.mxu0
    %v432 = vadd.f32 0.0, %v431
    %433 = vmatmul.f32.gmra.mxu0 %v412
    %v434 = vpop.f32.mrf.mxu0
    %v435 = vadd.f32 0.0, %v434
    %436 = vdwg.mxu0
    %v437 = vmax.f32 %v432, 1e-24
    %v438 = vmax.f32 %v435, 1e-24
    %v439 = vrsqrt.pop %v437
    %v440 = vmul.f32 %v439, %v437
    %v441 = vmul.f32 %v440, %v439
    %v442 = vmul.f32 0.5, %v441
    %v443 = vsub.f32 1.5, %v442
    %v444 = vmul.f32 %v439, %v443
    %vm445 = vweird.f32 %v437
    %vm446 = vweird.f32 %v439
    %vm447 = vmor %vm445, %vm446
    %v448 = vsel %vm447, %v439, %v444
    %v449 = vrsqrt.pop %v438
    %v450 = vmul.f32 %v449, %v438
    %v451 = vmul.f32 %v450, %v449
    %v452 = vmul.f32 0.5, %v451
    %v453 = vsub.f32 1.5, %v452
    %v454 = vmul.f32 %v449, %v453
    %vm455 = vweird.f32 %v438
    %vm456 = vweird.f32 %v449
    %vm457 = vmor %vm455, %vm456
    %v458 = vsel %vm457, %v449, %v454
    %460 = vset.pattern.permute.xlu0 0
    %461 = vperm.xlu0 %460, %v448
    %v462 = vpop.permute.xlu0 %461
    %465 = vset.pattern.permute.xlu0 0
    %466 = vperm.xlu0 %465, %v458
    %v467 = vpop.permute.xlu0 %466
    %v469 = vmul.f32 %v228, %v462
    %v470 = vmul.f32 %v405, %v467
    %v471 = vld [vmem:[%s4] sm:$0xff]
    %v472 = vld [vmem:[%s4 + $0x8] sm:$0xff]
    %v474 = vsel %vm48, %v469, 0
    %v477 = vsel %vm48, %v470, 0
    %479 = vmatpush.msra.mxu0 0.0
    %480 = vmatpush.msra.mxu0 0.0
    %481 = vmatpush.msra.mxu0 0.0
    %482 = vmatpush.msra.mxu0 0.0
    %483 = vmatpush.msra.mxu0 0.0
    %484 = vmatpush.msra.mxu0 0.0
    %485 = vmatpush.msra.mxu0 0.0
    %486 = vmatpush.msra.mxu0 0.0
    %487 = vmatpush.msra.mxu0 0.0
    %488 = vmatpush.msra.mxu0 0.0
    %489 = vmatpush.msra.mxu0 0.0
    %490 = vmatpush.msra.mxu0 0.0
    %491 = vmatpush.msra.mxu0 0.0
    %492 = vmatpush.msra.mxu0 0.0
    %493 = vmatpush.msra.mxu0 %v472
    %494 = vmatpush.msra.mxu0 %v471
    %495 = vmatmul.f32.gmra.mxu0 %v474
    %v496 = vpop.f32.mrf.mxu0
    %v497 = vadd.f32 0.0, %v496
    %498 = vmatmul.f32.gmra.mxu0 %v477
    %v499 = vpop.f32.mrf.mxu0
    %v500 = vadd.f32 0.0, %v499
    %501 = vdwg.mxu0
    %v502 = vld [vmem:[%s6] sm:$0x3]
    %v503 = vld [vmem:[%s5] sm:$0xff]
    %v504 = vld [vmem:[%s5 + $0x8] sm:$0xff]
    %v505 = vmul.f32 %v497, %v503
    %v506 = vmul.f32 %v500, %v504
    %v508 = vsel %vm48, %v502, 0
    %510 = vmatpush.msra.mxu0 0.0
    %511 = vmatpush.msra.mxu0 0.0
    %512 = vmatpush.msra.mxu0 0.0
    %513 = vmatpush.msra.mxu0 0.0
    %514 = vmatpush.msra.mxu0 0.0
    %515 = vmatpush.msra.mxu0 0.0
    %516 = vmatpush.msra.mxu0 0.0
    %517 = vmatpush.msra.mxu0 0.0
    %518 = vmatpush.msra.mxu0 0.0
    %519 = vmatpush.msra.mxu0 0.0
    %520 = vmatpush.msra.mxu0 0.0
    %521 = vmatpush.msra.mxu0 0.0
    %522 = vmatpush.msra.mxu0 0.0
    %523 = vmatpush.msra.mxu0 0.0
    %524 = vmatpush.msra.mxu0 %v506
    %525 = vmatpush.msra.mxu0 %v505
    %526 = vmatmul.f32.gmra.mxu0 %v508
    %v527 = vpop.f32.mrf.mxu0
    %v528 = vadd.f32 0.0, %v527
    %529 = vdwg.mxu0
    %v530 = vmul.f32 %v528, %v528
    %vm531 = vcmask 1041408
    %v532 = vsel %vm531, %v530, 0.0
    %533 = vadd.xlane.f32.xlu0 %v532
    %v534 = vpop.xlane.xlu0 %533
    %v535 = vmax.f32 %v534, 1e-24
    %v536 = vrsqrt.pop %v535
    %v537 = vmul.f32 %v536, %v535
    %v538 = vmul.f32 %v537, %v536
    %v539 = vmul.f32 0.5, %v538
    %v540 = vsub.f32 1.5, %v539
    %v541 = vmul.f32 %v536, %v540
    %vm542 = vweird.f32 %v535
    %vm543 = vweird.f32 %v536
    %vm544 = vmor %vm542, %vm543
    %v545 = vsel %vm544, %v536, %v541
    %v546 = vmul.f32 %v528, %v545
    %v547 = vld [vmem:[%s7] sm:$0xff]
    %v548 = vld [vmem:[%s7 + $0x8] sm:$0xff]
    %v549 = vld [vmem:[%s7 + $0x10] sm:$0xff]
    %v550 = vld [vmem:[%s7 + $0x18] sm:$0xff]
    %v551 = vld [vmem:[%s7 + $0x20] sm:$0xff]
    %v552 = vld [vmem:[%s7 + $0x28] sm:$0xff]
    %v553 = vld [vmem:[%s7 + $0x30] sm:$0xff]
    %v554 = vld [vmem:[%s7 + $0x38] sm:$0xff]
    %v555 = vld [vmem:[%s7 + $0x40] sm:$0xff]
    %v556 = vld [vmem:[%s7 + $0x48] sm:$0xff]
    %v557 = vld [vmem:[%s7 + $0x50] sm:$0xff]
    %v558 = vld [vmem:[%s7 + $0x58] sm:$0xff]
    %v559 = vld [vmem:[%s7 + $0x60] sm:$0xff]
    %v560 = vld [vmem:[%s7 + $0x68] sm:$0xff]
    %v561 = vld [vmem:[%s7 + $0x70] sm:$0xff]
    %v562 = vld [vmem:[%s7 + $0x78] sm:$0xff]
    %563 = vmatpush.msra.mxu0 %v562
    %564 = vmatpush.msra.mxu0 %v561
    %565 = vmatpush.msra.mxu0 %v560
    %566 = vmatpush.msra.mxu0 %v559
    %567 = vmatpush.msra.mxu0 %v558
    %568 = vmatpush.msra.mxu0 %v557
    %569 = vmatpush.msra.mxu0 %v556
    %570 = vmatpush.msra.mxu0 %v555
    %571 = vmatpush.msra.mxu0 %v554
    %572 = vmatpush.msra.mxu0 %v553
    %573 = vmatpush.msra.mxu0 %v552
    %574 = vmatpush.msra.mxu0 %v551
    %575 = vmatpush.msra.mxu0 %v550
    %576 = vmatpush.msra.mxu0 %v549
    %577 = vmatpush.msra.mxu0 %v548
    %578 = vmatpush.msra.mxu0 %v547
    %579 = vmatmul.f32.gmra.mxu0 %v546
    %v580 = vpop.f32.mrf.mxu0
    %v581 = vadd.f32 0.0, %v580
    %582 = vdwg.mxu0
    %vm583 = vcmask 254976
    %v584 = vsel %vm583, %v581, 0.0
    %v585 = vrot.slane %v584, 4
    %v586 = vadd.f32 %v584, %v585
    %v587 = vrot.slane %v586, 2
    %v588 = vadd.f32 %v586, %v587
    %v589 = vrot.slane %v588, 1
    %v590 = vadd.f32 %v588, %v589
    %v591 = vrcp.pop 2.0
    %v592 = vmul.f32 2.0, %v591
    %v593 = vsub.f32 1.0, %v592
    %v594 = vmul.f32 %v591, %v593
    %v595 = vadd.f32 %v591, %v594
    %vm596 = vweird.f32 %v591
    %v597 = vsel %vm596, %v591, %v595
    %v598 = vmul.f32 %v590, %v597
    %v599 = vsub.f32 %v581, %v598
    %v600 = vmul.f32 %v599, %v599
    %v601 = vsel %vm583, %v600, 0.0
    %v602 = vrot.slane %v601, 4
    %v603 = vadd.f32 %v601, %v602
    %v604 = vrot.slane %v603, 2
    %v605 = vadd.f32 %v603, %v604
    %v606 = vrot.slane %v605, 1
    %v607 = vadd.f32 %v605, %v606
    %v608 = vmul.f32 %v607, %v597
    %v609 = vadd.f32 %v608, 1e-05
    %v610 = vrsqrt.pop %v609
    %v611 = vmul.f32 %v610, %v609
    %v612 = vmul.f32 %v611, %v610
    %v613 = vmul.f32 0.5, %v612
    %v614 = vsub.f32 1.5, %v613
    %v615 = vmul.f32 %v610, %v614
    %vm616 = vweird.f32 %v609
    %vm617 = vweird.f32 %v610
    %vm618 = vmor %vm616, %vm617
    %v619 = vsel %vm618, %v610, %v615
    %v620 = vmul.f32 %v599, %v619
    %v621 = vld [vmem:[%s8] sm:$0xff]
    %v622 = vld [vmem:[%s8 + $0x8] sm:$0xff]
    %v623 = vld [vmem:[%s8 + $0x10] sm:$0xff]
    %v624 = vld [vmem:[%s8 + $0x18] sm:$0xff]
    %v625 = vld [vmem:[%s9] sm:$0x1]
    %v627 = vperm.slane %v625, 0
    %vm629 = vcmask 261120
    %v631 = vsel %vm629, %v620, 0
    %633 = vmatpush.msra.mxu0 0.0
    %634 = vmatpush.msra.mxu0 0.0
    %635 = vmatpush.msra.mxu0 0.0
    %636 = vmatpush.msra.mxu0 0.0
    %637 = vmatpush.msra.mxu0 0.0
    %638 = vmatpush.msra.mxu0 0.0
    %639 = vmatpush.msra.mxu0 0.0
    %640 = vmatpush.msra.mxu0 0.0
    %641 = vmatpush.msra.mxu0 0.0
    %642 = vmatpush.msra.mxu0 0.0
    %643 = vmatpush.msra.mxu0 0.0
    %644 = vmatpush.msra.mxu0 0.0
    %645 = vmatpush.msra.mxu0 %v624
    %646 = vmatpush.msra.mxu0 %v623
    %647 = vmatpush.msra.mxu0 %v622
    %648 = vmatpush.msra.mxu0 %v621
    %649 = vmatmul.f32.gmra.mxu0 %v631
    %v650 = vpop.f32.mrf.mxu0
    %v651 = vadd.f32 %v627, %v650
    %652 = vdwg.mxu0
    %v653 = vxor.u32 %v651, 2147483648
    %v654 = vmul.f32 %v653, 1.442695
    %v655 = vpow.pop %v654
    %v656 = vadd.f32 %v655, 1.0
    %v657 = vrcp.pop %v656
    %v658 = vmul.f32 %v656, %v657
    %v659 = vsub.f32 1.0, %v658
    %v660 = vmul.f32 %v657, %v659
    %v661 = vadd.f32 %v657, %v660
    %vm662 = vweird.f32 %v656
    %vm663 = vweird.f32 %v657
    %vm664 = vmor %vm662, %vm663
    %v665 = vsel %vm664, %v657, %v661
    %v666 = vand.u32 2147483647, %v656
    %vm667 = vcmp.eq.f32.partialorder %v666, 8.507059e+37
    %v668 = vand.u32 %v656, 2147483648
    %v669 = vor.u32 1.1754944e-38, %v668
    %v670 = vsel %vm667, %v669, %v665
    %v671 = vmul.f32 1.0, %v670
    %v672 = vmul.f32 %v620, %v671
    %673 = vst.msk [vmem:[#allocation2] sm:$0x3] %vm583, %v672
    // Predicated region
    $region42: #{netvlad_descriptor.1} parent=1 // pred_check
      _
    $region43: #{netvlad_descriptor.1} parent=1 // pred_check_branch
      %675 = sbr.rel (0) target = $region45
    $region44: #{netvlad_descriptor.1} parent=1 // pred_region
      %677 = vsyncadd [#allocation3], 0
      %s679 = sshll.u32 [#allocation2], 4
      %s680 = int_to_ptr.vmem [resolvable:$true] %s679
      %s681 = sshll.u32 %s10, 4
      %s682 = int_to_ptr.hbm [resolvable:$true] %s681
      %684 = dma.vmem_to_hbm [thread:$0]  %s680, 32, %s682, [#allocation3]
    $region45: #{netvlad_descriptor.1} parent=1 // pred_fallthru
      _
    // Predicated region
    $region46: #{netvlad_descriptor.1} parent=1 // pred_check
      _
    $region47: #{netvlad_descriptor.1} parent=1 // pred_check_branch
      %686 = sbr.rel (0) target = $region49
    $region48: #{netvlad_descriptor.1} parent=1 // pred_region
      %688 = dma.done [#allocation3], 32
    $region49: #{netvlad_descriptor.1} parent=1 // pred_fallthru
      _
    %689 = vsyncpa [#allocation3], 1

</llo_original>
